<compile_context>
chip_gen: v5e
topology: v5e:2x2
jax: 0.10.0
libtpu: 0.0.40
codegen_flags: <defaults>
</compile_context>

<pallas_src>
import functools

import numpy as np
import jax
import jax.numpy as jnp
from jax.experimental import pallas as pl
from jax.experimental.pallas import tpu as pltpu

IGNORE_INDEX = -100
AUX_R = 5.0


def _wce_sums_kernel(logits_ref, tgt_ref, w_ref, loss_ref, wsum_ref, *, num_classes):
    """Weighted-CE partial sums for one tile of rows.

    logits_ref: (C, tile_sub, 128)  classes on the leading axis, rows dense on (sublane, lane)
    tgt_ref:    (tile_sub, 128)     int32 targets; ignore_index / padded rows contribute 0
    w_ref:      (C, 1)              per-class weights (f32)
    loss_ref:   (1, 8, 128)         this step's partial sum of w[t] * nll (lane dense)
    wsum_ref:   (1, 8, 128)         this step's partial sum of w[t]
    """
    C = num_classes
    tgt = tgt_ref[...]                                    # (tile_sub, 128) int32
    w = w_ref[...].astype(jnp.float32)                    # (C, 1)

    # C is tiny and static -> fully unrolled elementwise VPU/EUP work, no cross-lane ops.
    rows = [logits_ref[c].astype(jnp.float32) for c in range(C)]   # each (tile_sub, 128)

    m = rows[0]
    for c in range(1, C):
        m = jnp.maximum(m, rows[c])
    s = jnp.exp(rows[0] - m)
    for c in range(1, C):
        s = s + jnp.exp(rows[c] - m)
    lse = jnp.log(s)                                      # logsumexp - m

    # Target logit and target-class weight via a C-way select.  ignore_index (-100) never
    # matches a class id, so ignored rows and the zero-logit padded tail keep w_row == 0 and
    # therefore contribute exactly 0 -- no extra masking needed anywhere.
    x_t = jnp.zeros_like(m)
    w_row = jnp.zeros_like(m)
    for c in range(C):
        hit = tgt == c
        x_t = jnp.where(hit, rows[c], x_t)
        w_row = jnp.where(hit, w[c:c + 1, :], w_row)

    contrib = w_row * ((m - x_t) + lse)                   # w[t] * (-log_softmax[t])

    # Fold this tile's sublanes down to a single lane-dense (8, 128) partial block.
    tile_sub = contrib.shape[0]
    loss_ref[0] = jnp.sum(contrib.reshape(tile_sub // 8, 8, 128), axis=0)
    wsum_ref[0] = jnp.sum(w_row.reshape(tile_sub // 8, 8, 128), axis=0)


def _weighted_ce_sums(logits, targets, class_weights, tile_rows=65536):
    """Returns (sum_i w[t_i]*nll_i, sum_i w[t_i]) over the rows of `logits` via one Pallas launch."""
    n_rows, C = logits.shape

    # Tiles are whole multiples of 1024 rows = (8 sublanes x 128 lanes), so every block and the
    # padded row count stay (8, 128)-aligned with zero in-kernel masking.
    tile_rows = max(1024, (int(tile_rows) // 1024) * 1024)
    tile_rows = min(tile_rows, int(pl.cdiv(n_rows, 1024)) * 1024)
    n_pad = int(pl.cdiv(n_rows, tile_rows)) * tile_rows
    n_sub = n_pad // 128
    tile_sub = tile_rows // 128
    n_steps = n_pad // tile_rows

    # Lane-dense layout: rows live on (sublane, lane), the tiny class axis leads.  This is the
    # single remaining materializing pass over the logits (pad + transpose fuse into one XLA
    # copy); targets pad with ignore_index so padded rows contribute 0.  Logits keep their input
    # dtype (bf16 passes straight through; the f32 upcast happens in-kernel).
    # TODO(synk): fuse this 4-way class de-interleave into the kernel to drop the extra HBM pass.
    logits_t = jnp.pad(logits, ((0, n_pad - n_rows), (0, 0))).T.reshape(C, n_sub, 128)
    tgt = jnp.pad(targets.astype(jnp.int32), (0, n_pad - n_rows),
                  constant_values=IGNORE_INDEX).reshape(n_sub, 128)
    w = class_weights.reshape(C, 1).astype(jnp.float32)

    kernel = functools.partial(_wce_sums_kernel, num_classes=C)
    part_loss, part_w = pl.pallas_call(
        kernel,
        out_shape=(jax.ShapeDtypeStruct((n_steps, 8, 128), jnp.float32),
                   jax.ShapeDtypeStruct((n_steps, 8, 128), jnp.float32)),
        grid_spec=pltpu.PrefetchScalarGridSpec(
            num_scalar_prefetch=0,
            grid=(n_steps,),
            in_specs=[
                pl.BlockSpec((C, tile_sub, 128), lambda i: (0, i, 0)),
                pl.BlockSpec((tile_sub, 128), lambda i: (i, 0)),
                pl.BlockSpec((C, 1), lambda i: (0, 0)),
            ],
            out_specs=[
                pl.BlockSpec((1, 8, 128), lambda i: (i, 0, 0)),
                pl.BlockSpec((1, 8, 128), lambda i: (i, 0, 0)),
            ],
        ),
        # Every step writes its own partial block -> no carried state -> the row-chunk axis can
        # be sharded across TensorCores (v7x megacore) safely.
        compiler_params=pltpu.CompilerParams(
            dimension_semantics=("parallel",)),
    )(logits_t, tgt, w)

    # Tiny final reduction (n_steps x 8 x 128 partials) in plain JAX.
    return jnp.sum(part_loss), jnp.sum(part_w)


def adaptive_cross_entropy_loss(inputs, targets, class_weights,
                                aux_r=AUX_R, tile_rows=65536):
    """Forward of AdaptiveCrossEntropyLoss: weighted CE(class) + aux_r * weighted CE(patch)."""
    class_pred, patch_pred = inputs
    class_tar, patch_tar = targets

    n_cls, C = class_pred.shape
    bc, word_size, num_classes = patch_pred.shape
    assert num_classes == C

    patch_pred_flat = patch_pred.reshape(-1, C)
    patch_tar_flat = patch_tar.reshape(-1)

    l_cls, w_cls = _weighted_ce_sums(class_pred, class_tar, class_weights, tile_rows)
    l_pat, w_pat = _weighted_ce_sums(patch_pred_flat, patch_tar_flat, class_weights, tile_rows)

    # Matches PyTorch: a fully-ignored term produces 0/0 -> NaN.
    return l_cls / w_cls + aux_r * (l_pat / w_pat)


def calculate_class_weights(label_counter):
    """Mirror of AdaptiveCrossEntropyLoss.calculate_class_weights on synthetic counts."""
    class_weights = [1.0, 1.0]
    total_counts_1_2_3 = sum(label_counter.get(i, 0) for i in range(1, 4))
    for i in range(2, 4):
        cnt = label_counter.get(i, 0)
        weight = total_counts_1_2_3 / cnt if cnt > 0 else 1.0
        class_weights.append(weight)
    min_weight = min(class_weights)
    class_weights = [wgt / min_weight for wgt in class_weights]
    return jnp.asarray(class_weights, dtype=jnp.float32)


if __name__ == "__main__":
    # Deterministic synthetic "dataset" label statistics (replaces iterating a torch Dataset).
    synthetic_label_counts = {1: 10, 2: 5, 3: 2}
    class_weights = calculate_class_weights(synthetic_label_counts)  # shape (4,)

    key = jax.random.PRNGKey(0)
    k1, k2, k3, k4, k5 = jax.random.split(key, 5)

    B, W, C = 8, 16, 4  # batch, word_size (patch seq), num classes

    class_pred = jax.random.normal(k1, (B, C), dtype=jnp.float32)
    class_tar = jax.random.randint(k2, (B,), 0, C, dtype=jnp.int32)

    patch_pred = jax.random.normal(k3, (B, W, C), dtype=jnp.float32)
    patch_tar = jax.random.randint(k4, (B, W), 0, C, dtype=jnp.int32)
    # sprinkle some ignore_index targets to exercise the ignore path
    drop = jax.random.uniform(k5, (B, W)) < 0.2
    patch_tar = jnp.where(drop, IGNORE_INDEX, patch_tar)

    loss_fn = jax.jit(adaptive_cross_entropy_loss)
    loss = loss_fn((class_pred, patch_pred), (class_tar, patch_tar), class_weights)
    loss = jax.block_until_ready(loss)

    # Pure-JAX reference check (weighted CE with ignore_index, mean reduction).
    def ref_ce(logits, tgt, w):
        logp = jax.nn.log_softmax(logits, axis=-1)
        valid = tgt != IGNORE_INDEX
        tgt_safe = jnp.where(valid, tgt, 0)
        nll = -jnp.take_along_axis(logp, tgt_safe[:, None], axis=-1)[:, 0]
        wr = jnp.where(valid, w[tgt_safe], 0.0)
        return jnp.sum(wr * nll) / jnp.sum(wr)

    ref = ref_ce(class_pred, class_tar, class_weights) + AUX_R * ref_ce(
        patch_pred.reshape(-1, C), patch_tar.reshape(-1), class_weights
    )
    np.testing.assert_allclose(np.asarray(loss), np.asarray(ref), rtol=1e-5, atol=1e-5)

    print("KERNEL_OK")
</pallas_src>

<mosaic_0001>
module attributes {stable_mosaic.version = 11 : i64} {
  func.func @_wce_sums_kernel(%arg0: i32, %arg1: memref<4x8x128xf32, #tpu.memory_space<vmem>>, %arg2: memref<8x128xi32, #tpu.memory_space<vmem>>, %arg3: memref<4x1xf32, #tpu.memory_space<vmem>>, %arg4: memref<1x8x128xf32, #tpu.memory_space<vmem>>, %arg5: memref<1x8x128xf32, #tpu.memory_space<vmem>>) attributes {dimension_semantics = [#tpu.dimension_semantics<parallel>], iteration_bounds = array<i64: 1>, scalar_prefetch = 0 : i64, scratch_operands = 0 : i64, tpu.core_type = #tpu.core_type<tc>, window_params = [{transform_indices = @transform_0, window_bounds = array<i64: 4, 8, 128>}, {transform_indices = @transform_1, window_bounds = array<i64: 8, 128>}, {pipeline_mode = #tpu.pipeline_mode<synchronous>, transform_indices = @transform_2, window_bounds = array<i64: 4, 1>}, {transform_indices = @transform_3, window_bounds = array<i64: 1, 8, 128>}, {transform_indices = @transform_4, window_bounds = array<i64: 1, 8, 128>}]} {
    %c0 = arith.constant 0 : index
    %c0_0 = arith.constant 0 : index
    %0 = vector.load %arg2[%c0, %c0_0] : memref<8x128xi32, #tpu.memory_space<vmem>>, vector<8x128xi32>
    %c0_1 = arith.constant 0 : index
    %c0_2 = arith.constant 0 : index
    %1 = vector.load %arg3[%c0_1, %c0_2] : memref<4x1xf32, #tpu.memory_space<vmem>>, vector<4x1xf32>
    %c0_3 = arith.constant 0 : index
    %c0_4 = arith.constant 0 : index
    %c0_5 = arith.constant 0 : index
    %2 = vector.load %arg1[%c0_3, %c0_4, %c0_5] : memref<4x8x128xf32, #tpu.memory_space<vmem>>, vector<1x8x128xf32>
    %3 = vector.shape_cast %2 : vector<1x8x128xf32> to vector<8x128xf32>
    %c1 = arith.constant 1 : index
    %c0_6 = arith.constant 0 : index
    %c0_7 = arith.constant 0 : index
    %4 = vector.load %arg1[%c1, %c0_6, %c0_7] : memref<4x8x128xf32, #tpu.memory_space<vmem>>, vector<1x8x128xf32>
    %5 = vector.shape_cast %4 : vector<1x8x128xf32> to vector<8x128xf32>
    %c2 = arith.constant 2 : index
    %c0_8 = arith.constant 0 : index
    %c0_9 = arith.constant 0 : index
    %6 = vector.load %arg1[%c2, %c0_8, %c0_9] : memref<4x8x128xf32, #tpu.memory_space<vmem>>, vector<1x8x128xf32>
    %7 = vector.shape_cast %6 : vector<1x8x128xf32> to vector<8x128xf32>
    %c3 = arith.constant 3 : index
    %c0_10 = arith.constant 0 : index
    %c0_11 = arith.constant 0 : index
    %8 = vector.load %arg1[%c3, %c0_10, %c0_11] : memref<4x8x128xf32, #tpu.memory_space<vmem>>, vector<1x8x128xf32>
    %9 = vector.shape_cast %8 : vector<1x8x128xf32> to vector<8x128xf32>
    %10 = arith.maximumf %3, %5 : vector<8x128xf32>
    %11 = arith.maximumf %10, %7 : vector<8x128xf32>
    %12 = arith.maximumf %11, %9 : vector<8x128xf32>
    %13 = arith.subf %3, %12 : vector<8x128xf32>
    %14 = math.exp %13 : vector<8x128xf32>
    %15 = arith.subf %5, %12 : vector<8x128xf32>
    %16 = math.exp %15 : vector<8x128xf32>
    %17 = arith.addf %14, %16 : vector<8x128xf32>
    %18 = arith.subf %7, %12 : vector<8x128xf32>
    %19 = math.exp %18 : vector<8x128xf32>
    %20 = arith.addf %17, %19 : vector<8x128xf32>
    %21 = arith.subf %9, %12 : vector<8x128xf32>
    %22 = math.exp %21 : vector<8x128xf32>
    %23 = arith.addf %20, %22 : vector<8x128xf32>
    %24 = math.log %23 : vector<8x128xf32>
    %cst = arith.constant 0.000000e+00 : f32
    %25 = vector.broadcast %cst : f32 to vector<8x128xf32>
    %cst_12 = arith.constant 0.000000e+00 : f32
    %26 = vector.broadcast %cst_12 : f32 to vector<8x128xf32>
    %c0_i32 = arith.constant 0 : i32
    %27 = vector.broadcast %c0_i32 : i32 to vector<8x128xi32>
    %28 = arith.cmpi eq, %0, %27 : vector<8x128xi32>
    %29 = arith.select %28, %3, %25 : vector<8x128xi1>, vector<8x128xf32>
    %30 = vector.extract_strided_slice %1 {offsets = [0, 0], sizes = [1, 1], strides = [1, 1]} : vector<4x1xf32> to vector<1x1xf32>
    %31 = vector.shape_cast %30 : vector<1x1xf32> to vector<1x1xf32>
    %32 = vector.broadcast %31 : vector<1x1xf32> to vector<8x128xf32>
    %33 = arith.select %28, %32, %26 : vector<8x128xi1>, vector<8x128xf32>
    %c1_i32 = arith.constant 1 : i32
    %34 = vector.broadcast %c1_i32 : i32 to vector<8x128xi32>
    %35 = arith.cmpi eq, %0, %34 : vector<8x128xi32>
    %36 = arith.select %35, %5, %29 : vector<8x128xi1>, vector<8x128xf32>
    %37 = vector.extract_strided_slice %1 {offsets = [1, 0], sizes = [1, 1], strides = [1, 1]} : vector<4x1xf32> to vector<1x1xf32>
    %38 = vector.shape_cast %37 : vector<1x1xf32> to vector<1x1xf32>
    %39 = vector.broadcast %38 : vector<1x1xf32> to vector<8x128xf32>
    %40 = arith.select %35, %39, %33 : vector<8x128xi1>, vector<8x128xf32>
    %c2_i32 = arith.constant 2 : i32
    %41 = vector.broadcast %c2_i32 : i32 to vector<8x128xi32>
    %42 = arith.cmpi eq, %0, %41 : vector<8x128xi32>
    %43 = arith.select %42, %7, %36 : vector<8x128xi1>, vector<8x128xf32>
    %44 = vector.extract_strided_slice %1 {offsets = [2, 0], sizes = [1, 1], strides = [1, 1]} : vector<4x1xf32> to vector<1x1xf32>
    %45 = vector.shape_cast %44 : vector<1x1xf32> to vector<1x1xf32>
    %46 = vector.broadcast %45 : vector<1x1xf32> to vector<8x128xf32>
    %47 = arith.select %42, %46, %40 : vector<8x128xi1>, vector<8x128xf32>
    %c3_i32 = arith.constant 3 : i32
    %48 = vector.broadcast %c3_i32 : i32 to vector<8x128xi32>
    %49 = arith.cmpi eq, %0, %48 : vector<8x128xi32>
    %50 = arith.select %49, %9, %43 : vector<8x128xi1>, vector<8x128xf32>
    %51 = vector.extract_strided_slice %1 {offsets = [3, 0], sizes = [1, 1], strides = [1, 1]} : vector<4x1xf32> to vector<1x1xf32>
    %52 = vector.shape_cast %51 : vector<1x1xf32> to vector<1x1xf32>
    %53 = vector.broadcast %52 : vector<1x1xf32> to vector<8x128xf32>
    %54 = arith.select %49, %53, %47 : vector<8x128xi1>, vector<8x128xf32>
    %55 = arith.subf %12, %50 : vector<8x128xf32>
    %56 = arith.addf %55, %24 : vector<8x128xf32>
    %57 = arith.mulf %54, %56 : vector<8x128xf32>
    %58 = vector.shape_cast %57 : vector<8x128xf32> to vector<1x8x128xf32>
    %cst_13 = arith.constant dense<0.000000e+00> : vector<8x128xf32>
    %59 = vector.multi_reduction <add>, %58, %cst_13 [0] : vector<1x8x128xf32> to vector<8x128xf32>
    %c0_14 = arith.constant 0 : index
    %c0_15 = arith.constant 0 : index
    %c0_16 = arith.constant 0 : index
    %60 = vector.load %arg4[%c0_14, %c0_15, %c0_16] : memref<1x8x128xf32, #tpu.memory_space<vmem>>, vector<1x8x128xf32>
    %61 = vector.shape_cast %60 : vector<1x8x128xf32> to vector<8x128xf32>
    %62 = vector.shape_cast %59 : vector<8x128xf32> to vector<1x8x128xf32>
    tpu.vector_store %arg4[%c0_14, %c0_15, %c0_16], %62 {strides = array<i32>} : memref<1x8x128xf32, #tpu.memory_space<vmem>>, vector<1x8x128xf32>,
    %63 = vector.shape_cast %54 : vector<8x128xf32> to vector<1x8x128xf32>
    %cst_17 = arith.constant dense<0.000000e+00> : vector<8x128xf32>
    %64 = vector.multi_reduction <add>, %63, %cst_17 [0] : vector<1x8x128xf32> to vector<8x128xf32>
    %c0_18 = arith.constant 0 : index
    %c0_19 = arith.constant 0 : index
    %c0_20 = arith.constant 0 : index
    %65 = vector.load %arg5[%c0_18, %c0_19, %c0_20] : memref<1x8x128xf32, #tpu.memory_space<vmem>>, vector<1x8x128xf32>
    %66 = vector.shape_cast %65 : vector<1x8x128xf32> to vector<8x128xf32>
    %67 = vector.shape_cast %64 : vector<8x128xf32> to vector<1x8x128xf32>
    tpu.vector_store %arg5[%c0_18, %c0_19, %c0_20], %67 {strides = array<i32>} : memref<1x8x128xf32, #tpu.memory_space<vmem>>, vector<1x8x128xf32>,
    return
  }
  func.func @transform_0(%arg0: i32) -> (i32, i32, i32) {
    %c0_i32 = arith.constant 0 : i32
    %c0_i32_0 = arith.constant 0 : i32
    %c0_i32_1 = arith.constant 0 : i32
    return %c0_i32, %arg0, %c0_i32_0 : i32, i32, i32
  }
  func.func @transform_1(%arg0: i32) -> (i32, i32) {
    %c0_i32 = arith.constant 0 : i32
    %c0_i32_0 = arith.constant 0 : i32
    return %arg0, %c0_i32 : i32, i32
  }
  func.func @transform_2(%arg0: i32) -> (i32, i32) {
    %c0_i32 = arith.constant 0 : i32
    %c0_i32_0 = arith.constant 0 : i32
    %c0_i32_1 = arith.constant 0 : i32
    return %c0_i32, %c0_i32_0 : i32, i32
  }
  func.func @transform_3(%arg0: i32) -> (i32, i32, i32) {
    %c0_i32 = arith.constant 0 : i32
    %c0_i32_0 = arith.constant 0 : i32
    %c0_i32_1 = arith.constant 0 : i32
    return %arg0, %c0_i32, %c0_i32_0 : i32, i32, i32
  }
  func.func @transform_4(%arg0: i32) -> (i32, i32, i32) {
    %c0_i32 = arith.constant 0 : i32
    %c0_i32_0 = arith.constant 0 : i32
    %c0_i32_1 = arith.constant 0 : i32
    return %arg0, %c0_i32, %c0_i32_0 : i32, i32, i32
  }
}

</mosaic_0001>

<llo_original>
// kernel: adaptive_cross_entropy_loss.3
$region0: #{adaptive_cross_entropy_loss.3}
  #allocation0 [shape = 'u32[]', space=smem, size = 0x4, offset = 0x4, fixed_abs, tag = 'smem constant byte address 0x4 - core index']
  #allocation1 [shape = 'u32[72,128]{1,0:T(1,128)}', space=vmem, size = 0x9000, scoped, tag = 'internal scratch']
  %s0 = inlined_call_operand.vmem [shape: f32[4,8,128], index: 0, kind: input, shape index: {}]
  %s1 = inlined_call_operand.vmem [shape: s32[8,128], index: 1, kind: input, shape index: {}]
  %s2 = inlined_call_operand.vmem [shape: f32[4,1], index: 2, kind: input, shape index: {}]
  %s3 = inlined_call_operand.vmem [shape: f32[1,8,128], index: 3, kind: output, shape index: {0}]
  %s4 = inlined_call_operand.vmem [shape: f32[1,8,128], index: 4, kind: output, shape index: {1}]
  %5 = xla_tuple %s3, %s4
  %s6 = sld [smem:[#allocation0]]
  $region30: #{adaptive_cross_entropy_loss.3} parent=0
    _
  %s8 = ssub.s32 1, %s6
  %s9 = scalar_select 0, %s8, %s6
  // Predicated region
  $region2: #{adaptive_cross_entropy_loss.3} parent=0 // pred_check
    _
  $region3: #{adaptive_cross_entropy_loss.3} parent=0 // pred_check_branch
    %11 = sbr.rel (0) target = $region5
  $region4: #{adaptive_cross_entropy_loss.3} parent=0 // pred_region
    _
  $region5: #{adaptive_cross_entropy_loss.3} parent=0 // pred_fallthru
    _
  // Predicated region
  $region6: #{adaptive_cross_entropy_loss.3} parent=0 // pred_check
    _
  $region7: #{adaptive_cross_entropy_loss.3} parent=0 // pred_check_branch
    %13 = sbr.rel (0) target = $region9
  $region8: #{adaptive_cross_entropy_loss.3} parent=0 // pred_region
    _
  $region9: #{adaptive_cross_entropy_loss.3} parent=0 // pred_fallthru
    _
  // Predicated region
  $region10: #{adaptive_cross_entropy_loss.3} parent=0 // pred_check
    _
  $region11: #{adaptive_cross_entropy_loss.3} parent=0 // pred_check_branch
    %15 = sbr.rel (0) target = $region13
  $region12: #{adaptive_cross_entropy_loss.3} parent=0 // pred_region
    _
  $region13: #{adaptive_cross_entropy_loss.3} parent=0 // pred_fallthru
    _
  %v16 = vld [vmem:[%s1] sm:$0xff]
  %v17 = vld [vmem:[%s2] sm:$0xf]
  %v18 = vld [vmem:[%s0] sm:$0xff]
  %s19 = scalar_lea.vmem %s0, 8
  %v20 = vld [vmem:[%s19] sm:$0xff]
  %s21 = scalar_lea.vmem %s0, 16
  %v22 = vld [vmem:[%s21] sm:$0xff]
  %s23 = scalar_lea.vmem %s0, 24
  %v24 = vld [vmem:[%s23] sm:$0xff]
  %v25 = vmax.f32 %v18, %v20
  %v26 = vmax.f32 %v25, %v22
  %v27 = vmax.f32 %v26, %v24
  %v28 = vsub.f32 %v18, %v27
  %v29 = vmul.f32 %v28, 1.442695
  %v30 = vpow.pop %v29
  %v31 = vsub.f32 %v20, %v27
  %v32 = vmul.f32 %v31, 1.442695
  %v33 = vpow.pop %v32
  %v34 = vadd.f32 %v30, %v33
  %v35 = vsub.f32 %v22, %v27
  %v36 = vmul.f32 %v35, 1.442695
  %v37 = vpow.pop %v36
  %v38 = vadd.f32 %v34, %v37
  %v39 = vsub.f32 %v24, %v27
  %v40 = vmul.f32 %v39, 1.442695
  %v41 = vpow.pop %v40
  %v42 = vadd.f32 %v38, %v41
  %v43 = vlog2.pop %v42
  %v44 = vmul.f32 %v43, 0.6931472
  %vm45 = vcmp.eq.s32.totalorder %v16, 0
  %v46 = vsel %vm45, %v18, 0.0
  %s48 = vtos %v17
  %v49 = vstv %s48
  %v51 = vsel %vm45, %v49, 0.0
  %vm52 = vcmp.eq.s32.totalorder %v16, 1
  %v53 = vsel %vm52, %v20, %v46
  %v54 = vrot.slane %v17, 1
  %s55 = vtos %v54
  %v56 = vstv %s55
  %v58 = vsel %vm52, %v56, %v51
  %vm59 = vcmp.eq.s32.totalorder %v16, 2
  %v60 = vsel %vm59, %v22, %v53
  %v61 = vrot.slane %v17, 2
  %s62 = vtos %v61
  %v63 = vstv %s62
  %v65 = vsel %vm59, %v63, %v58
  %vm66 = vcmp.eq.s32.totalorder %v16, 3
  %v67 = vsel %vm66, %v24, %v60
  %v68 = vrot.slane %v17, 3
  %s69 = vtos %v68
  %v70 = vstv %s69
  %v72 = vsel %vm66, %v70, %v65
  %v73 = vsub.f32 %v27, %v67
  %v74 = vadd.f32 %v73, %v44
  %v75 = vmul.f32 %v72, %v74
  %v76 = vadd.f32 %v75, 0.0
  %77 = vst [vmem:[%s3] sm:$0xff] %v76
  %v78 = vadd.f32 %v72, 0.0
  %79 = vst [vmem:[%s4] sm:$0xff] %v78
  // Predicated region
  $region14: #{adaptive_cross_entropy_loss.3} parent=0 // pred_check
    _
  $region15: #{adaptive_cross_entropy_loss.3} parent=0 // pred_check_branch
    %81 = sbr.rel (0) target = $region17
  $region16: #{adaptive_cross_entropy_loss.3} parent=0 // pred_region
    _
  $region17: #{adaptive_cross_entropy_loss.3} parent=0 // pred_fallthru
    _
  // Predicated region
  $region18: #{adaptive_cross_entropy_loss.3} parent=0 // pred_check
    _
  $region19: #{adaptive_cross_entropy_loss.3} parent=0 // pred_check_branch
    %83 = sbr.rel (0) target = $region21
  $region20: #{adaptive_cross_entropy_loss.3} parent=0 // pred_region
    _
  $region21: #{adaptive_cross_entropy_loss.3} parent=0 // pred_fallthru
    _
  // Predicated region
  $region22: #{adaptive_cross_entropy_loss.3} parent=0 // pred_check
    _
  $region23: #{adaptive_cross_entropy_loss.3} parent=0 // pred_check_branch
    %85 = sbr.rel (0) target = $region25
  $region24: #{adaptive_cross_entropy_loss.3} parent=0 // pred_region
    _
  $region25: #{adaptive_cross_entropy_loss.3} parent=0 // pred_fallthru
    _
  // Predicated region
  $region26: #{adaptive_cross_entropy_loss.3} parent=0 // pred_check
    _
  $region27: #{adaptive_cross_entropy_loss.3} parent=0 // pred_check_branch
    %87 = sbr.rel (0) target = $region29
  $region28: #{adaptive_cross_entropy_loss.3} parent=0 // pred_region
    _
  $region29: #{adaptive_cross_entropy_loss.3} parent=0 // pred_fallthru
    _

</llo_original>
